<compile_context>
chip_gen: v6e
topology: v6e:2x2x1
jax: 0.10.0
libtpu: 0.0.40
codegen_flags: <defaults>
</compile_context>

<pallas_src>
import jax
import jax.numpy as jnp
from jax.experimental import pallas as pl
from jax.experimental.pallas import tpu as pltpu

OUT_LANES_MIN = 128      # packed output width is kept a multiple of this


def _round_up(a, b):
    return ((a + b - 1) // b) * b


def _vmem_limit_bytes():
    """Generation-aware scoped-VMEM budget (3/4 of physical, <= 96 MiB)."""
    try:
        cap = int(pltpu.get_tpu_info().vmem_capacity_bytes)
    except Exception:
        cap = 64 * 1024 * 1024          # conservative (v7x-sized) fallback
    return min((cap * 3) // 4, 96 * 1024 * 1024)


# ---------------------------------------------------------------------------
# Kernel
# ---------------------------------------------------------------------------
def _ensemble_mlp_kernel(x_ref, w1_ref, b1_ref, w2_ref, b2_ref, w3_ref, b3_ref,
                         o_ref):
    """One (N-tile, sample-group) cell of the lane-packed ensemble MLP.

    x_ref : [TN, D_IN]                 shared collocation points (this N tile)
    w1_ref: [D_IN, GH]  b1_ref: [1, GH]   packed layer-1 for THIS sample group
    w2_ref: [GH, GH]    b2_ref: [1, GH]   block-diagonal layer-2
    w3_ref: [GH, GDP]   b3_ref: [1, GDP]  block-diagonal layer-3 (out padded)
    o_ref : [TN, GDP]                  lane-dense packed output for this group
    """
    x = x_ref[...]                 # [TN, D_IN]
    w1 = w1_ref[...]               # [D_IN, GH]
    b1 = b1_ref[...]               # [1, GH]

    # Layer 1 on the VPU: with K = D_IN (= 2) an MXU contraction is ~126/128
    # zero; two broadcast FMAs are cheaper and keep the MXU free for layers 2/3.
    acc = jnp.broadcast_to(b1, (x.shape[0], w1.shape[1]))
    for d in range(x.shape[1]):    # static, tiny (D_IN == 2)
        acc = acc + x[:, d:d + 1] * w1[d:d + 1, :]
    h1 = jnp.tanh(acc)

    # Layers 2/3 on the MXU; block-diagonal weights keep samples independent.
    # Operands follow the packed weight dtype (bf16 when use_bf16_mxu=True);
    # accumulation stays f32 via preferred_element_type.
    h2 = jnp.tanh(
        jnp.dot(h1.astype(w2_ref.dtype), w2_ref[...],
                preferred_element_type=jnp.float32) + b2_ref[...]
    )
    o_ref[...] = (
        jnp.dot(h2.astype(w3_ref.dtype), w3_ref[...],
                preferred_element_type=jnp.float32) + b3_ref[...]
    )


# ---------------------------------------------------------------------------
# Weight packing (layout plumbing, runs once outside the kernel)
# ---------------------------------------------------------------------------
def pack_ensemble_params(params, *, pack_width=128, mxu_dtype=jnp.float32):
    """Pack S per-sample MLPs into `pack_width`-lane sample groups.

    H = 32 would use only 32 lanes of every vreg / MXU column / EUP tanh;
    packing G = pack_width // H samples per group (concat W1, block-diagonal
    W2/W3, per-sample output padded to DP lanes) recovers utilization.
    pack_width = 128 is native on v5e; 256 matches the v6e/v7x MXU.
    """
    w1, b1, w2, b2, w3, b3 = params
    S, d_in, H = w1.shape
    d_out = w3.shape[2]

    G = max(1, pack_width // H)           # samples packed per group
    DP = max(OUT_LANES_MIN // G, d_out)   # per-sample padded output width
    NG = pl.cdiv(S, G)                    # number of sample groups
    S_pad = NG * G

    def pad_samples(a):
        return jnp.pad(a, ((0, S_pad - S),) + ((0, 0),) * (a.ndim - 1))

    w1, b1, w2, b2, w3, b3 = map(pad_samples, (w1, b1, w2, b2, w3, b3))
    eye_g = jnp.eye(G, dtype=w1.dtype)

    # Layer 1: concat G samples' [d_in, H] along the out dim -> [NG, d_in, G*H]
    w1p = w1.reshape(NG, G, d_in, H).transpose(0, 2, 1, 3).reshape(NG, d_in, G * H)
    b1p = b1.reshape(NG, 1, G * H)

    # Layer 2: block-diagonal [NG, G*H, G*H]
    w2p = jnp.einsum("ngij,gh->ngihj", w2.reshape(NG, G, H, H), eye_g)
    w2p = w2p.reshape(NG, G * H, G * H).astype(mxu_dtype)
    b2p = b2.reshape(NG, 1, G * H)

    # Layer 3: pad out dim to DP (lane-dense store), then block-diagonal
    w3 = jnp.pad(w3, ((0, 0), (0, 0), (0, DP - d_out)))
    b3 = jnp.pad(b3, ((0, 0), (0, DP - d_out)))
    w3p = jnp.einsum("ngid,gh->ngihd", w3.reshape(NG, G, H, DP), eye_g)
    w3p = w3p.reshape(NG, G * H, G * DP).astype(mxu_dtype)
    b3p = b3.reshape(NG, 1, G * DP)

    meta = dict(S=S, G=G, DP=DP, NG=NG, d_out=d_out)
    return (w1p, b1p, w2p, b2p, w3p, b3p), meta


def unpack_output(out_packed, meta, n_points):
    """[NG, N_pad, G*DP] lane-packed kernel output -> [S, N, d_out]."""
    NG, G, DP = meta["NG"], meta["G"], meta["DP"]
    n_pad = out_packed.shape[1]
    out = out_packed.reshape(NG, n_pad, G, DP).transpose(0, 2, 1, 3)
    out = out.reshape(NG * G, n_pad, DP)
    return out[:meta["S"], :n_points, :meta["d_out"]]


# ---------------------------------------------------------------------------
# Forward wrapper
# ---------------------------------------------------------------------------
def bayes_nn_forward(x, params, *, tile_n=1024, pack_width=128,
                     use_bf16_mxu=False, return_packed=False):
    """Ensemble forward: x [N, 2] -> output [S, N, 3].

    tile_n       : rows of x per grid step (rounded to a multiple of 8).
    pack_width   : lane-packing contraction width (128 v5e-native, 256 v6e/v7x).
    use_bf16_mxu : bf16 MXU operands (f32 accumulate); ~1e-2 level error.
    return_packed: return (packed [NG, N_pad, G*DP], meta) and skip the
                   wrapper-side unpack pass (preferred for large N consumers).
    """
    w1 = params[0]
    S, d_in, H = w1.shape
    N = x.shape[0]

    mxu_dtype = jnp.bfloat16 if use_bf16_mxu else jnp.float32
    packed, meta = pack_ensemble_params(params, pack_width=pack_width,
                                        mxu_dtype=mxu_dtype)
    w1p, b1p, w2p, b2p, w3p, b3p = packed
    NG = meta["NG"]
    GH = w2p.shape[1]
    out_lanes = w3p.shape[2]          # G * DP (multiple of 128 for this module)

    # N tiling: multiples of 8 sublanes; keep >= 2 tiles on the leading
    # "parallel" axis when N allows it so v7x megacore can split the grid.
    TN = max(8, min(tile_n, _round_up(N, 8)))
    TN = _round_up(TN, 8)
    if N > 8 and pl.cdiv(_round_up(N, 8), TN) < 2:
        TN = _round_up(pl.cdiv(N, 2), 8)
    N_pad = _round_up(N, TN)
    x_pad = jnp.pad(x.astype(jnp.float32), ((0, N_pad - N), (0, 0)))
    n_tiles = N_pad // TN

    grid = (n_tiles, NG)              # leading N-tile axis => megacore split

    cost = pl.CostEstimate(
        flops=2 * NG * N_pad * (d_in * GH + GH * GH + GH * out_lanes),
        transcendentals=2 * NG * N_pad * GH,
        bytes_accessed=int(4 * x_pad.size
                           + sum(int(p.size) * p.dtype.itemsize for p in packed)
                           + 4 * NG * N_pad * out_lanes),
    )

    out_packed = pl.pallas_call(
        _ensemble_mlp_kernel,
        out_shape=jax.ShapeDtypeStruct((NG, N_pad, out_lanes), jnp.float32),
        grid_spec=pltpu.PrefetchScalarGridSpec(
            num_scalar_prefetch=0,
            grid=grid,
            in_specs=[
                # collocation points: tiled along N, re-used across groups
                pl.BlockSpec((TN, d_in), lambda n, g: (n, 0)),
                # per-group packed weights: VMEM bounded independent of S;
                # the per-step weight DMA is hidden by double-buffering.
                pl.BlockSpec((None, d_in, GH), lambda n, g: (g, 0, 0)),
                pl.BlockSpec((None, 1, GH), lambda n, g: (g, 0, 0)),
                pl.BlockSpec((None, GH, GH), lambda n, g: (g, 0, 0)),
                pl.BlockSpec((None, 1, GH), lambda n, g: (g, 0, 0)),
                pl.BlockSpec((None, GH, out_lanes), lambda n, g: (g, 0, 0)),
                pl.BlockSpec((None, 1, out_lanes), lambda n, g: (g, 0, 0)),
            ],
            out_specs=pl.BlockSpec((None, TN, out_lanes), lambda n, g: (g, n, 0)),
        ),
        compiler_params=pltpu.CompilerParams(
            dimension_semantics=("parallel", "parallel"),
            vmem_limit_bytes=_vmem_limit_bytes(),
        ),
        cost_estimate=cost,
    )(x_pad, w1p, b1p, w2p, b2p, w3p, b3p)

    if return_packed:
        return out_packed, meta
    # Unpack lane-packed output back to [S, N, d_out] (outside the kernel).
    return unpack_output(out_packed, meta, N)


# ---------------------------------------------------------------------------
# Parameter init + pure-JAX reference
# ---------------------------------------------------------------------------
def init_params(key, n_samples=2, d_in=2, hidden=32, d_out=3):
    """Kaiming-normal weights (as in init_normal), uniform PyTorch-style biases.
    Weights stored as [in, out] (y = x @ W + b)."""
    ks = jax.random.split(key, 6)

    def kaiming(k, shape, fan_in):
        std = jnp.sqrt(2.0 / fan_in)
        return std * jax.random.normal(k, shape, dtype=jnp.float32)

    def bias(k, shape, fan_in):
        bound = 1.0 / jnp.sqrt(fan_in)
        return jax.random.uniform(k, shape, minval=-bound, maxval=bound,
                                  dtype=jnp.float32)

    w1 = kaiming(ks[0], (n_samples, d_in, hidden), d_in)
    b1 = bias(ks[1], (n_samples, hidden), d_in)
    w2 = kaiming(ks[2], (n_samples, hidden, hidden), hidden)
    b2 = bias(ks[3], (n_samples, hidden), hidden)
    w3 = kaiming(ks[4], (n_samples, hidden, d_out), hidden)
    b3 = bias(ks[5], (n_samples, d_out), hidden)
    return (w1, b1, w2, b2, w3, b3)


def bayes_nn_forward_ref(x, params):
    w1, b1, w2, b2, w3, b3 = params
    h1 = jnp.tanh(jnp.einsum("nd,sdh->snh", x, w1) + b1[:, None, :])
    h2 = jnp.tanh(jnp.einsum("snh,shk->snk", h1, w2) + b2[:, None, :])
    return jnp.einsum("snk,sko->sno", h2, w3) + b3[:, None, :]


# TODO(synk): log_beta / beta_eq (Gamma-sampled Parameters) do not affect
# forward(); they belong to the loss terms (_log_joint / criterion) and are
# not part of this kernel.

if __name__ == "__main__":
    key = jax.random.PRNGKey(0)
    k_x, k_p, k_x2, k_p2 = jax.random.split(key, 4)

    D_IN, D_OUT, HIDDEN = 2, 3, 32

    # Config 1: module defaults (n_samples=2); small tile to exercise N tiling.
    S, N = 2, 64
    x = jax.random.normal(k_x, (N, D_IN), dtype=jnp.float32)
    params = init_params(k_p, n_samples=S, d_in=D_IN, hidden=HIDDEN, d_out=D_OUT)
    out = jax.block_until_ready(bayes_nn_forward(x, params, tile_n=32))
    ref = bayes_nn_forward_ref(x, params)
    assert out.shape == (S, N, D_OUT)
    assert jnp.allclose(out, ref, atol=1e-5, rtol=1e-5)

    # Config 2: S not a multiple of the lane-packing group -> padding path,
    # default tile (clamped so the parallel N axis keeps two tiles).
    S2, N2 = 5, 40
    x2 = jax.random.normal(k_x2, (N2, D_IN), dtype=jnp.float32)
    params2 = init_params(k_p2, n_samples=S2, d_in=D_IN, hidden=HIDDEN,
                          d_out=D_OUT)
    out2 = jax.block_until_ready(bayes_nn_forward(x2, params2))
    ref2 = bayes_nn_forward_ref(x2, params2)
    assert out2.shape == (S2, N2, D_OUT)
    assert jnp.allclose(out2, ref2, atol=1e-5, rtol=1e-5)

    # Config 3: bf16 MXU operands + 256-wide (v6e/v7x MXU-native) packing.
    out3 = jax.block_until_ready(
        bayes_nn_forward(x2, params2, use_bf16_mxu=True, pack_width=256))
    assert out3.shape == (S2, N2, D_OUT)
    assert jnp.allclose(out3, ref2, atol=5e-2, rtol=5e-2)

    print("KERNEL_OK")
</pallas_src>

<mosaic_0001>
module attributes {stable_mosaic.version = 11 : i64} {
  func.func @_ensemble_mlp_kernel(%arg0: i32, %arg1: i32, %arg2: memref<32x2xf32, #tpu.memory_space<vmem>>, %arg3: memref<1x2x128xf32, #tpu.memory_space<vmem>>, %arg4: memref<1x1x128xf32, #tpu.memory_space<vmem>>, %arg5: memref<1x128x128xf32, #tpu.memory_space<vmem>>, %arg6: memref<1x1x128xf32, #tpu.memory_space<vmem>>, %arg7: memref<1x128x128xf32, #tpu.memory_space<vmem>>, %arg8: memref<1x1x128xf32, #tpu.memory_space<vmem>>, %arg9: memref<1x32x128xf32, #tpu.memory_space<vmem>>) attributes {dimension_semantics = [#tpu.dimension_semantics<parallel>, #tpu.dimension_semantics<parallel>], iteration_bounds = array<i64: 2, 1>, scalar_prefetch = 0 : i64, scratch_operands = 0 : i64, tpu.core_type = #tpu.core_type<tc>, window_params = [{transform_indices = @transform_0, window_bounds = array<i64: 32, 2>}, {transform_indices = @transform_1, window_bounds = array<i64: 1, 2, 128>}, {transform_indices = @transform_2, window_bounds = array<i64: 1, 1, 128>}, {transform_indices = @transform_3, window_bounds = array<i64: 1, 128, 128>}, {transform_indices = @transform_4, window_bounds = array<i64: 1, 1, 128>}, {transform_indices = @transform_5, window_bounds = array<i64: 1, 128, 128>}, {transform_indices = @transform_6, window_bounds = array<i64: 1, 1, 128>}, {transform_indices = @transform_7, window_bounds = array<i64: 1, 32, 128>}]} {
    %c0 = arith.constant 0 : index
    %c0_0 = arith.constant 0 : index
    %0 = vector.load %arg2[%c0, %c0_0] : memref<32x2xf32, #tpu.memory_space<vmem>>, vector<32x2xf32>
    %c0_1 = arith.constant 0 : index
    %c0_2 = arith.constant 0 : index
    %c0_3 = arith.constant 0 : index
    %1 = vector.load %arg3[%c0_1, %c0_2, %c0_3] : memref<1x2x128xf32, #tpu.memory_space<vmem>>, vector<1x2x128xf32>
    %2 = vector.shape_cast %1 : vector<1x2x128xf32> to vector<2x128xf32>
    %c0_4 = arith.constant 0 : index
    %c0_5 = arith.constant 0 : index
    %c0_6 = arith.constant 0 : index
    %3 = vector.load %arg4[%c0_4, %c0_5, %c0_6] : memref<1x1x128xf32, #tpu.memory_space<vmem>>, vector<1x1x128xf32>
    %4 = vector.shape_cast %3 : vector<1x1x128xf32> to vector<1x128xf32>
    %5 = vector.shape_cast %4 : vector<1x128xf32> to vector<1x128xf32>
    %6 = vector.broadcast %5 : vector<1x128xf32> to vector<32x128xf32>
    %7 = vector.extract_strided_slice %0 {offsets = [0, 0], sizes = [32, 1], strides = [1, 1]} : vector<32x2xf32> to vector<32x1xf32>
    %8 = vector.extract_strided_slice %2 {offsets = [0, 0], sizes = [1, 128], strides = [1, 1]} : vector<2x128xf32> to vector<1x128xf32>
    %9 = vector.broadcast %7 : vector<32x1xf32> to vector<32x128xf32>
    %10 = vector.broadcast %8 : vector<1x128xf32> to vector<32x128xf32>
    %11 = arith.mulf %9, %10 : vector<32x128xf32>
    %12 = arith.addf %6, %11 : vector<32x128xf32>
    %13 = vector.extract_strided_slice %0 {offsets = [0, 1], sizes = [32, 1], strides = [1, 1]} : vector<32x2xf32> to vector<32x1xf32>
    %14 = vector.extract_strided_slice %2 {offsets = [1, 0], sizes = [1, 128], strides = [1, 1]} : vector<2x128xf32> to vector<1x128xf32>
    %15 = vector.broadcast %13 : vector<32x1xf32> to vector<32x128xf32>
    %16 = vector.broadcast %14 : vector<1x128xf32> to vector<32x128xf32>
    %17 = arith.mulf %15, %16 : vector<32x128xf32>
    %18 = arith.addf %12, %17 : vector<32x128xf32>
    %19 = math.tanh %18 : vector<32x128xf32>
    %c0_7 = arith.constant 0 : index
    %c0_8 = arith.constant 0 : index
    %c0_9 = arith.constant 0 : index
    %20 = vector.load %arg5[%c0_7, %c0_8, %c0_9] : memref<1x128x128xf32, #tpu.memory_space<vmem>>, vector<1x128x128xf32>
    %21 = vector.shape_cast %20 : vector<1x128x128xf32> to vector<128x128xf32>
    %cst = arith.constant dense<0.000000e+00> : vector<32x128xf32>
    %22 = tpu.matmul %19, %21, %cst {dimension_numbers = #tpu.dot_dimension_numbers<[1], [0], [0], [1], [0, 0, 1, 1], [], []>} : vector<32x128xf32>, vector<128x128xf32>, vector<32x128xf32> -> vector<32x128xf32>
    %c0_10 = arith.constant 0 : index
    %c0_11 = arith.constant 0 : index
    %c0_12 = arith.constant 0 : index
    %23 = vector.load %arg6[%c0_10, %c0_11, %c0_12] : memref<1x1x128xf32, #tpu.memory_space<vmem>>, vector<1x1x128xf32>
    %24 = vector.shape_cast %23 : vector<1x1x128xf32> to vector<1x128xf32>
    %25 = vector.broadcast %24 : vector<1x128xf32> to vector<32x128xf32>
    %26 = arith.addf %22, %25 : vector<32x128xf32>
    %27 = math.tanh %26 : vector<32x128xf32>
    %c0_13 = arith.constant 0 : index
    %c0_14 = arith.constant 0 : index
    %c0_15 = arith.constant 0 : index
    %28 = vector.load %arg7[%c0_13, %c0_14, %c0_15] : memref<1x128x128xf32, #tpu.memory_space<vmem>>, vector<1x128x128xf32>
    %29 = vector.shape_cast %28 : vector<1x128x128xf32> to vector<128x128xf32>
    %cst_16 = arith.constant dense<0.000000e+00> : vector<32x128xf32>
    %30 = tpu.matmul %27, %29, %cst_16 {dimension_numbers = #tpu.dot_dimension_numbers<[1], [0], [0], [1], [0, 0, 1, 1], [], []>} : vector<32x128xf32>, vector<128x128xf32>, vector<32x128xf32> -> vector<32x128xf32>
    %c0_17 = arith.constant 0 : index
    %c0_18 = arith.constant 0 : index
    %c0_19 = arith.constant 0 : index
    %31 = vector.load %arg8[%c0_17, %c0_18, %c0_19] : memref<1x1x128xf32, #tpu.memory_space<vmem>>, vector<1x1x128xf32>
    %32 = vector.shape_cast %31 : vector<1x1x128xf32> to vector<1x128xf32>
    %33 = vector.broadcast %32 : vector<1x128xf32> to vector<32x128xf32>
    %34 = arith.addf %30, %33 : vector<32x128xf32>
    %c0_20 = arith.constant 0 : index
    %c0_21 = arith.constant 0 : index
    %c0_22 = arith.constant 0 : index
    %35 = vector.load %arg9[%c0_20, %c0_21, %c0_22] : memref<1x32x128xf32, #tpu.memory_space<vmem>>, vector<1x32x128xf32>
    %36 = vector.shape_cast %35 : vector<1x32x128xf32> to vector<32x128xf32>
    %37 = vector.shape_cast %34 : vector<32x128xf32> to vector<1x32x128xf32>
    tpu.vector_store %arg9[%c0_20, %c0_21, %c0_22], %37 {strides = array<i32>} : memref<1x32x128xf32, #tpu.memory_space<vmem>>, vector<1x32x128xf32>,
    return
  }
  func.func @transform_0(%arg0: i32, %arg1: i32) -> (i32, i32) {
    %c0_i32 = arith.constant 0 : i32
    %c0_i32_0 = arith.constant 0 : i32
    return %arg0, %c0_i32 : i32, i32
  }
  func.func @transform_1(%arg0: i32, %arg1: i32) -> (i32, i32, i32) {
    %c0_i32 = arith.constant 0 : i32
    %c0_i32_0 = arith.constant 0 : i32
    %c0_i32_1 = arith.constant 0 : i32
    return %arg1, %c0_i32, %c0_i32_0 : i32, i32, i32
  }
  func.func @transform_2(%arg0: i32, %arg1: i32) -> (i32, i32, i32) {
    %c0_i32 = arith.constant 0 : i32
    %c0_i32_0 = arith.constant 0 : i32
    %c0_i32_1 = arith.constant 0 : i32
    return %arg1, %c0_i32, %c0_i32_0 : i32, i32, i32
  }
  func.func @transform_3(%arg0: i32, %arg1: i32) -> (i32, i32, i32) {
    %c0_i32 = arith.constant 0 : i32
    %c0_i32_0 = arith.constant 0 : i32
    %c0_i32_1 = arith.constant 0 : i32
    return %arg1, %c0_i32, %c0_i32_0 : i32, i32, i32
  }
  func.func @transform_4(%arg0: i32, %arg1: i32) -> (i32, i32, i32) {
    %c0_i32 = arith.constant 0 : i32
    %c0_i32_0 = arith.constant 0 : i32
    %c0_i32_1 = arith.constant 0 : i32
    return %arg1, %c0_i32, %c0_i32_0 : i32, i32, i32
  }
  func.func @transform_5(%arg0: i32, %arg1: i32) -> (i32, i32, i32) {
    %c0_i32 = arith.constant 0 : i32
    %c0_i32_0 = arith.constant 0 : i32
    %c0_i32_1 = arith.constant 0 : i32
    return %arg1, %c0_i32, %c0_i32_0 : i32, i32, i32
  }
  func.func @transform_6(%arg0: i32, %arg1: i32) -> (i32, i32, i32) {
    %c0_i32 = arith.constant 0 : i32
    %c0_i32_0 = arith.constant 0 : i32
    %c0_i32_1 = arith.constant 0 : i32
    return %arg1, %c0_i32, %c0_i32_0 : i32, i32, i32
  }
  func.func @transform_7(%arg0: i32, %arg1: i32) -> (i32, i32, i32) {
    %c0_i32 = arith.constant 0 : i32
    %c0_i32_0 = arith.constant 0 : i32
    return %arg1, %arg0, %c0_i32 : i32, i32, i32
  }
}

</mosaic_0001>

<llo_original>
// kernel: tpu_custom_call.1
$region0: #{tpu_custom_call.1}
  #allocation0 [shape = 'u32[]', space=smem, size = 0x4, offset = 0x4, fixed_abs, tag = 'smem constant byte address 0x4 - core index']
  #allocation1 [shape = 'u32[144,128]{1,0:T(1,128)}', space=vmem, size = 0x12000, scoped, tag = 'internal scratch']
  %s0 = inlined_call_operand.vmem [shape: f32[64,2], index: 0, kind: input, shape index: {}]
  %s1 = inlined_call_operand.vmem [shape: f32[1,2,128], index: 1, kind: input, shape index: {}]
  %s2 = inlined_call_operand.vmem [shape: f32[1,1,128], index: 2, kind: input, shape index: {}]
  %s3 = inlined_call_operand.hbm [shape: f32[1,128,128], index: 3, kind: input, shape index: {}]
  %s4 = inlined_call_operand.vmem [shape: f32[1,1,128], index: 4, kind: input, shape index: {}]
  %s5 = inlined_call_operand.hbm [shape: f32[1,128,128], index: 5, kind: input, shape index: {}]
  %s6 = inlined_call_operand.vmem [shape: f32[1,1,128], index: 6, kind: input, shape index: {}]
  %s7 = inlined_call_operand.hbm [shape: f32[1,64,128], index: 7, kind: output, shape index: {}]
  %s8 = sld [smem:[#allocation0]]
  $region69: #{tpu_custom_call.1} parent=0
    _
  %s10 = ssub.s32 1, %s8
  %s11 = scalar_select 0, %s10, %s8
  $region1: #{tpu_custom_call.1} parent=0
    #allocation2 [shape = 'u8[65536]{0}', space=vmem, size = 0x10000, scoped, tag = 'input window, operand 3, single buffered']
    #allocation3 [shape = 's32[2]{0}', space=sflag, size = 0x8, scoped, tag = 'scoped memory for tpu_custom_call.1']
    #allocation4 [shape = 's32[2]{0}', space=sflag, size = 0x8, scoped, tag = 'scoped memory for tpu_custom_call.1']
    #allocation5 [shape = 'u8[65536]{0}', space=vmem, size = 0x10000, scoped, tag = 'input window, operand 5, single buffered']
    #allocation6 [shape = 's32[1]{0}', space=sflag, size = 0x4, scoped, tag = 'scoped memory for tpu_custom_call.1']
    #allocation7 [shape = 'u8[32768]{0}', space=vmem, size = 0x8000, scoped, tag = 'output window, operand 0']
    %12 = vsyncpa [#allocation3], 0
    %13 = vsyncpa [#allocation6], 0
    %14 = vsyncpa [#allocation4], 0
    %s15 = scalar_lea.sflag [#allocation4], 1
    %16 = vsyncpa %s15, 0
    loop: start=0, step=1, limit=4
    $region2: #{tpu_custom_call.1} parent=1 // loop_pre_header
      _
    $region3: #{tpu_custom_call.1} parent=1 // loop_header
      %s18 = sphi 0, %s22
      %p19 = scmp.ge.s32.totalorder %s18, 4
      %s25 = sphi 0, %s37
      %s26 = sphi 0, %s33
      %s27 = sphi 0, %s25
      %s28 = sphi 0, %s26
      %s29 = sphi 0, %s27
      %s30 = sphi 0, %s28
      %s40 = sphi 0, %s42
      %s43 = sphi 0, %s40
      %s44 = sphi 0, %s43
      %s60 = sphi 0, %s44
      %s66 = sphi 0, %s68
      %s69 = sphi 0, %s66
      %s70 = sphi 0, %s69
      %s86 = sphi 0, %s70
      %s92 = sphi 0, %s94
      %s95 = sphi 0, %s92
      %s96 = sphi 0, %s95
      %s112 = sphi 0, %s96
      %s118 = sphi 0, %s120
      %s121 = sphi 0, %s118
      %s122 = sphi 0, %s121
      %s138 = sphi 0, %s122
      %s144 = sphi 0, %s146
      %s147 = sphi 0, %s144
      %s148 = sphi 0, %s147
      %s164 = sphi 0, %s148
      %s170 = sphi 0, %s172
      %s173 = sphi 0, %s170
      %s174 = sphi 0, %s173
      %s190 = sphi 0, %s174
      %s196 = sphi 0, %s198
      %s199 = sphi 0, %s196
      %s200 = sphi 0, %s199
      %s216 = sphi 0, %s200
      %s224 = sphi 0, %s226
      %s227 = sphi 0, %s224
      %s228 = sphi 0, %s227
      %s244 = sphi 0, %s228
    $region4: #{tpu_custom_call.1} parent=1 // loop_header_branch
      %21 = sbr.rel (%p19) target = $region8
    $region5: #{tpu_custom_call.1} parent=1 // loop_body
      %s23 = ssub.s32 %s18, 1
      %s24 = ssub.s32 %s18, 2
      %s31 = sadd.s32 1, %s26
      %p32 = scmp.ge.s32.totalorder %s31, 1
      %s33 = scalar_select %p32, 0, %s31
      %s34 = sadd.s32 1, %s25
      %s35 = scalar_select %p32, %s34, %s25
      %p36 = scmp.ge.s32.totalorder %s35, 2
      %s37 = scalar_select %p36, 0, %s35
      %s38 = ssub.s32 %s25, %s37
      %p39 = scmp.eq.s32.totalorder %s38, 0
      %s41 = sadd.s32 %s40, 1
      %s42 = scalar_select %p39, %s40, %s41
      %p45 = pneg %p39
      %p46 = scmp.eq.s32.totalorder %s18, 1
      %p47 = por %p45, %p46
      %p48 = scmp.ne.s32.totalorder %s40, %s43
      %p49 = scmp.eq.s32.totalorder %s18, 0
      %p50 = por %p48, %p49
      %p51 = scmp.ne.s32.totalorder %s40, %s43
      %p52 = scmp.eq.s32.totalorder %s23, 1
      %p53 = por %p51, %p52
      %p54 = scmp.ne.s32.totalorder %s43, %s44
      %p55 = scmp.eq.s32.totalorder %s23, 0
      %p56 = por %p54, %p55
      %p57 = scmp.ne.s32.totalorder %s43, %s44
      %p58 = scmp.eq.s32.totalorder %s24, 1
      %p59 = por %p57, %p58
      %p61 = scmp.ne.s32.totalorder %s44, %s60
      %p62 = scmp.eq.s32.totalorder %s24, 0
      %p63 = por %p61, %p62
      %s64 = ssub.s32 %s26, %s33
      %p65 = scmp.eq.s32.totalorder %s64, 0
      %s67 = sadd.s32 %s66, 1
      %s68 = scalar_select %p65, %s66, %s67
      %p71 = pneg %p65
      %p72 = scmp.eq.s32.totalorder %s18, 1
      %p73 = por %p71, %p72
      %p74 = scmp.ne.s32.totalorder %s66, %s69
      %p75 = scmp.eq.s32.totalorder %s18, 0
      %p76 = por %p74, %p75
      %p77 = scmp.ne.s32.totalorder %s66, %s69
      %p78 = scmp.eq.s32.totalorder %s23, 1
      %p79 = por %p77, %p78
      %p80 = scmp.ne.s32.totalorder %s69, %s70
      %p81 = scmp.eq.s32.totalorder %s23, 0
      %p82 = por %p80, %p81
      %p83 = scmp.ne.s32.totalorder %s69, %s70
      %p84 = scmp.eq.s32.totalorder %s24, 1
      %p85 = por %p83, %p84
      %p87 = scmp.ne.s32.totalorder %s70, %s86
      %p88 = scmp.eq.s32.totalorder %s24, 0
      %p89 = por %p87, %p88
      %s90 = ssub.s32 %s26, %s33
      %p91 = scmp.eq.s32.totalorder %s90, 0
      %s93 = sadd.s32 %s92, 1
      %s94 = scalar_select %p91, %s92, %s93
      %p97 = pneg %p91
      %p98 = scmp.eq.s32.totalorder %s18, 1
      %p99 = por %p97, %p98
      %p100 = scmp.ne.s32.totalorder %s92, %s95
      %p101 = scmp.eq.s32.totalorder %s18, 0
      %p102 = por %p100, %p101
      %p103 = scmp.ne.s32.totalorder %s92, %s95
      %p104 = scmp.eq.s32.totalorder %s23, 1
      %p105 = por %p103, %p104
      %p106 = scmp.ne.s32.totalorder %s95, %s96
      %p107 = scmp.eq.s32.totalorder %s23, 0
      %p108 = por %p106, %p107
      %p109 = scmp.ne.s32.totalorder %s95, %s96
      %p110 = scmp.eq.s32.totalorder %s24, 1
      %p111 = por %p109, %p110
      %p113 = scmp.ne.s32.totalorder %s96, %s112
      %p114 = scmp.eq.s32.totalorder %s24, 0
      %p115 = por %p113, %p114
      %s116 = ssub.s32 %s26, %s33
      %p117 = scmp.eq.s32.totalorder %s116, 0
      %s119 = sadd.s32 %s118, 1
      %s120 = scalar_select %p117, %s118, %s119
      %p123 = pneg %p117
      %p124 = scmp.eq.s32.totalorder %s18, 1
      %p125 = por %p123, %p124
      %p126 = scmp.ne.s32.totalorder %s118, %s121
      %p127 = scmp.eq.s32.totalorder %s18, 0
      %p128 = por %p126, %p127
      %p129 = scmp.ne.s32.totalorder %s118, %s121
      %p130 = scmp.eq.s32.totalorder %s23, 1
      %p131 = por %p129, %p130
      %p132 = scmp.ne.s32.totalorder %s121, %s122
      %p133 = scmp.eq.s32.totalorder %s23, 0
      %p134 = por %p132, %p133
      %p135 = scmp.ne.s32.totalorder %s121, %s122
      %p136 = scmp.eq.s32.totalorder %s24, 1
      %p137 = por %p135, %p136
      %p139 = scmp.ne.s32.totalorder %s122, %s138
      %p140 = scmp.eq.s32.totalorder %s24, 0
      %p141 = por %p139, %p140
      %s142 = ssub.s32 %s26, %s33
      %p143 = scmp.eq.s32.totalorder %s142, 0
      %s145 = sadd.s32 %s144, 1
      %s146 = scalar_select %p143, %s144, %s145
      %p149 = pneg %p143
      %p150 = scmp.eq.s32.totalorder %s18, 1
      %p151 = por %p149, %p150
      %p152 = scmp.ne.s32.totalorder %s144, %s147
      %p153 = scmp.eq.s32.totalorder %s18, 0
      %p154 = por %p152, %p153
      %p155 = scmp.ne.s32.totalorder %s144, %s147
      %p156 = scmp.eq.s32.totalorder %s23, 1
      %p157 = por %p155, %p156
      %p158 = scmp.ne.s32.totalorder %s147, %s148
      %p159 = scmp.eq.s32.totalorder %s23, 0
      %p160 = por %p158, %p159
      %p161 = scmp.ne.s32.totalorder %s147, %s148
      %p162 = scmp.eq.s32.totalorder %s24, 1
      %p163 = por %p161, %p162
      %p165 = scmp.ne.s32.totalorder %s148, %s164
      %p166 = scmp.eq.s32.totalorder %s24, 0
      %p167 = por %p165, %p166
      %s168 = ssub.s32 %s26, %s33
      %p169 = scmp.eq.s32.totalorder %s168, 0
      %s171 = sadd.s32 %s170, 1
      %s172 = scalar_select %p169, %s170, %s171
      %p175 = pneg %p169
      %p176 = scmp.eq.s32.totalorder %s18, 1
      %p177 = por %p175, %p176
      %p178 = scmp.ne.s32.totalorder %s170, %s173
      %p179 = scmp.eq.s32.totalorder %s18, 0
      %p180 = por %p178, %p179
      %p181 = scmp.ne.s32.totalorder %s170, %s173
      %p182 = scmp.eq.s32.totalorder %s23, 1
      %p183 = por %p181, %p182
      %p184 = scmp.ne.s32.totalorder %s173, %s174
      %p185 = scmp.eq.s32.totalorder %s23, 0
      %p186 = por %p184, %p185
      %p187 = scmp.ne.s32.totalorder %s173, %s174
      %p188 = scmp.eq.s32.totalorder %s24, 1
      %p189 = por %p187, %p188
      %p191 = scmp.ne.s32.totalorder %s174, %s190
      %p192 = scmp.eq.s32.totalorder %s24, 0
      %p193 = por %p191, %p192
      %s194 = ssub.s32 %s26, %s33
      %p195 = scmp.eq.s32.totalorder %s194, 0
      %s197 = sadd.s32 %s196, 1
      %s198 = scalar_select %p195, %s196, %s197
      %p201 = pneg %p195
      %p202 = scmp.eq.s32.totalorder %s18, 1
      %p203 = por %p201, %p202
      %p204 = scmp.ne.s32.totalorder %s196, %s199
      %p205 = scmp.eq.s32.totalorder %s18, 0
      %p206 = por %p204, %p205
      %p207 = scmp.ne.s32.totalorder %s196, %s199
      %p208 = scmp.eq.s32.totalorder %s23, 1
      %p209 = por %p207, %p208
      %p210 = scmp.ne.s32.totalorder %s199, %s200
      %p211 = scmp.eq.s32.totalorder %s23, 0
      %p212 = por %p210, %p211
      %p213 = scmp.ne.s32.totalorder %s199, %s200
      %p214 = scmp.eq.s32.totalorder %s24, 1
      %p215 = por %p213, %p214
      %p217 = scmp.ne.s32.totalorder %s200, %s216
      %p218 = scmp.eq.s32.totalorder %s24, 0
      %p219 = por %p217, %p218
      %s220 = ssub.s32 %s26, %s33
      %s221 = ssub.s32 %s25, %s37
      %s222 = sor.u32 %s220, %s221
      %p223 = scmp.eq.s32.totalorder %s222, 0
      %s225 = sadd.s32 %s224, 1
      %s226 = scalar_select %p223, %s224, %s225
      %p229 = pneg %p223
      %p230 = scmp.eq.s32.totalorder %s18, 1
      %p231 = por %p229, %p230
      %p232 = scmp.ne.s32.totalorder %s224, %s227
      %p233 = scmp.eq.s32.totalorder %s18, 0
      %p234 = por %p232, %p233
      %p235 = scmp.ne.s32.totalorder %s224, %s227
      %p236 = scmp.eq.s32.totalorder %s23, 1
      %p237 = por %p235, %p236
      %p238 = scmp.ne.s32.totalorder %s227, %s228
      %p239 = scmp.eq.s32.totalorder %s23, 0
      %p240 = por %p238, %p239
      %p241 = scmp.ne.s32.totalorder %s227, %s228
      %p242 = scmp.eq.s32.totalorder %s24, 1
      %p243 = por %p241, %p242
      %p245 = scmp.ne.s32.totalorder %s228, %s244
      %p246 = scmp.eq.s32.totalorder %s24, 0
      %p247 = por %p245, %p246
      %p248 = scmp.le.s32.totalorder 1, %s18
      %p249 = scmp.lt.s32.totalorder %s18, 3
      %p250 = pnand %p248, %p249
      %p251 = pneg %p250
      // Predicated region
      $region9: #{tpu_custom_call.1} parent=5 // pred_check
        _
      $region10: #{tpu_custom_call.1} parent=5 // pred_check_branch
        %253 = sbr.rel (%p250) target = $region12
      $region11: #{tpu_custom_call.1} parent=5 // pred_region
        %s254 = ssub.s32 %s18, 1
        // Predicated region
        $region13: #{tpu_custom_call.1} parent=11 // pred_check
          %p255 = pneg %p82
        $region14: #{tpu_custom_call.1} parent=11 // pred_check_branch
          %257 = sbr.rel (%p255) target = $region16
        $region15: #{tpu_custom_call.1} parent=11 // pred_region
          %p258 = scmp.lt.s32.totalorder %s28, 0
          %s259 = scalar_select %p258, %s28, 0
          %s260 = smul.addr %s259, 2
          %s261 = scalar_lea.vmem %s1, %s260
        $region16: #{tpu_custom_call.1} parent=11 // pred_fallthru
          _
        // Predicated region
        $region17: #{tpu_custom_call.1} parent=11 // pred_check
          %p262 = pneg %p108
        $region18: #{tpu_custom_call.1} parent=11 // pred_check_branch
          %264 = sbr.rel (%p262) target = $region20
        $region19: #{tpu_custom_call.1} parent=11 // pred_region
          %p265 = scmp.lt.s32.totalorder %s28, 0
          %s266 = scalar_select %p265, %s28, 0
          %s267 = scalar_lea.vmem %s2, %s266
        $region20: #{tpu_custom_call.1} parent=11 // pred_fallthru
          _
        // Predicated region
        $region21: #{tpu_custom_call.1} parent=11 // pred_check
          %p268 = pneg %p134
        $region22: #{tpu_custom_call.1} parent=11 // pred_check_branch
          %270 = sbr.rel (%p268) target = $region24
        $region23: #{tpu_custom_call.1} parent=11 // pred_region
          %s272 = ssub.s32 2048, 2048
          %273 = vsyncadd [#allocation3], %s272
          %s274 = smul.addr %s28, 16
          %s275 = smul.addr %s274, 128
          %s276 = scalar_lea.hbm %s3, %s275
          %s277 = sshll.u32 [#allocation2], 4
          %s278 = int_to_ptr.vmem [resolvable:$true] %s277
          %283 = dma.hbm_to_vmem [thread:$0]  %s276, 2048, %s278, [#allocation3], 128, 128, 8
        $region24: #{tpu_custom_call.1} parent=11 // pred_fallthru
          _
        // Predicated region
        $region25: #{tpu_custom_call.1} parent=11 // pred_check
          %p284 = pneg %p160
        $region26: #{tpu_custom_call.1} parent=11 // pred_check_branch
          %286 = sbr.rel (%p284) target = $region28
        $region27: #{tpu_custom_call.1} parent=11 // pred_region
          %p287 = scmp.lt.s32.totalorder %s28, 0
          %s288 = scalar_select %p287, %s28, 0
          %s289 = scalar_lea.vmem %s4, %s288
        $region28: #{tpu_custom_call.1} parent=11 // pred_fallthru
          _
        // Predicated region
        $region29: #{tpu_custom_call.1} parent=11 // pred_check
          %p290 = pneg %p186
        $region30: #{tpu_custom_call.1} parent=11 // pred_check_branch
          %292 = sbr.rel (%p290) target = $region32
        $region31: #{tpu_custom_call.1} parent=11 // pred_region
          %s294 = ssub.s32 2048, 2048
          %295 = vsyncadd [#allocation6], %s294
          %s296 = smul.addr %s28, 16
          %s297 = smul.addr %s296, 128
          %s298 = scalar_lea.hbm %s5, %s297
          %s299 = sshll.u32 [#allocation5], 4
          %s300 = int_to_ptr.vmem [resolvable:$true] %s299
          %305 = dma.hbm_to_vmem [thread:$0]  %s298, 2048, %s300, [#allocation6], 128, 128, 8
        $region32: #{tpu_custom_call.1} parent=11 // pred_fallthru
          _
        // Predicated region
        $region33: #{tpu_custom_call.1} parent=11 // pred_check
          %p306 = pneg %p212
        $region34: #{tpu_custom_call.1} parent=11 // pred_check_branch
          %308 = sbr.rel (%p306) target = $region36
        $region35: #{tpu_custom_call.1} parent=11 // pred_region
          %p309 = scmp.lt.s32.totalorder %s28, 0
          %s310 = scalar_select %p309, %s28, 0
          %s311 = scalar_lea.vmem %s6, %s310
        $region36: #{tpu_custom_call.1} parent=11 // pred_fallthru
          _
      $region12: #{tpu_custom_call.1} parent=5 // pred_fallthru
        _
      %p312 = scmp.lt.s32.totalorder %s18, 2
      // Predicated region
      $region37: #{tpu_custom_call.1} parent=5 // pred_check
        %p313 = pneg %p312
      $region38: #{tpu_custom_call.1} parent=5 // pred_check_branch
        %315 = sbr.rel (%p313) target = $region40
      $region39: #{tpu_custom_call.1} parent=5 // pred_region
        // Predicated region
        $region41: #{tpu_custom_call.1} parent=39 // pred_check
          %p316 = pneg %p50
        $region42: #{tpu_custom_call.1} parent=39 // pred_check_branch
          %318 = sbr.rel (%p316) target = $region44
        $region43: #{tpu_custom_call.1} parent=39 // pred_region
          %s319 = smul.u32 4, %s25
          %p320 = scmp.lt.s32.totalorder %s319, 7
          %s321 = scalar_select %p320, %s319, 7
          %s322 = smul.addr %s321, 8
          %s323 = scalar_lea.vmem %s0, %s322
          %s324 = smul.u32 4, %s25
        $region44: #{tpu_custom_call.1} parent=39 // pred_fallthru
          _
      $region40: #{tpu_custom_call.1} parent=5 // pred_fallthru
        _
      %p325 = scmp.le.s32.totalorder 1, %s18
      %p326 = scmp.lt.s32.totalorder %s18, 3
      %p327 = pnand %p325, %p326
      %p328 = pneg %p327
      // Predicated region
      $region45: #{tpu_custom_call.1} parent=5 // pred_check
        _
      $region46: #{tpu_custom_call.1} parent=5 // pred_check_branch
        %330 = sbr.rel (%p327) target = $region48
      $region47: #{tpu_custom_call.1} parent=5 // pred_region
        %s331 = ssub.s32 %s18, 1
        // Predicated region
        $region49: #{tpu_custom_call.1} parent=47 // pred_check
          %p332 = pneg %p134
        $region50: #{tpu_custom_call.1} parent=47 // pred_check_branch
          %334 = sbr.rel (%p332) target = $region52
        $region51: #{tpu_custom_call.1} parent=47 // pred_region
          %335 = dma.done [#allocation3], 2048
        $region52: #{tpu_custom_call.1} parent=47 // pred_fallthru
          _
        // Predicated region
        $region53: #{tpu_custom_call.1} parent=47 // pred_check
          %p336 = pneg %p186
        $region54: #{tpu_custom_call.1} parent=47 // pred_check_branch
          %338 = sbr.rel (%p336) target = $region56
        $region55: #{tpu_custom_call.1} parent=47 // pred_region
          %339 = dma.done [#allocation6], 2048
        $region56: #{tpu_custom_call.1} parent=47 // pred_fallthru
          _
        %s340 = smul.u32 4, %s27
        %p341 = scmp.lt.s32.totalorder %s340, 7
        %s342 = scalar_select %p341, %s340, 7
        %s343 = smul.addr %s342, 8
        %s344 = scalar_lea.vmem %s0, %s343
        %p345 = pneg %p56
        %p346 = pneg %p53
        %p347 = scmp.lt.s32.totalorder %s28, 0
        %s348 = scalar_select %p347, %s28, 0
        %s349 = smul.addr %s348, 2
        %s350 = scalar_lea.vmem %s1, %s349
        %p351 = pneg %p82
        %p352 = pneg %p79
        %p353 = scmp.lt.s32.totalorder %s28, 0
        %s354 = scalar_select %p353, %s28, 0
        %s355 = scalar_lea.vmem %s2, %s354
        %p356 = pneg %p108
        %p357 = pneg %p105
        %p358 = pneg %p134
        %p359 = pneg %p131
        %p360 = scmp.lt.s32.totalorder %s28, 0
        %s361 = scalar_select %p360, %s28, 0
        %s362 = scalar_lea.vmem %s4, %s361
        %p363 = pneg %p160
        %p364 = pneg %p157
        %p365 = pneg %p186
        %p366 = pneg %p183
        %p367 = scmp.lt.s32.totalorder %s28, 0
        %s368 = scalar_select %p367, %s28, 0
        %s369 = scalar_lea.vmem %s6, %s368
        %p370 = pneg %p212
        %p371 = pneg %p209
        %p372 = pneg %p240
        %p373 = pneg %p237
        %s374 = sand.u32 %s227, 1
        %s375 = scalar_lea.sflag [#allocation4], %s374
        %s376 = sand.u32 %s227, 1
        %s377 = smul.addr %s376, 32
        %s378 = scalar_lea.vmem [#allocation7], %s377
        %s379 = smul.u32 4, %s27
        %p380 = scmp.lt.s32.totalorder %s379, 7
        %s381 = scalar_select %p380, %s379, 7
        %s382 = smul.addr %s381, 8
        %s383 = scalar_lea.vmem %s0, %s382
        %s384 = smul.u32 4, %s27
        %p385 = scmp.lt.s32.totalorder %s28, 0
        %s386 = scalar_select %p385, %s28, 0
        %s387 = smul.addr %s386, 2
        %s388 = scalar_lea.vmem %s1, %s387
        %p389 = scmp.lt.s32.totalorder %s28, 0
        %s390 = scalar_select %p389, %s28, 0
        %s391 = scalar_lea.vmem %s2, %s390
        %p392 = scmp.lt.s32.totalorder %s28, 0
        %s393 = scalar_select %p392, %s28, 0
        %s394 = scalar_lea.vmem %s4, %s393
        %p395 = scmp.lt.s32.totalorder %s28, 0
        %s396 = scalar_select %p395, %s28, 0
        %s397 = scalar_lea.vmem %s6, %s396
        %s398 = smul.u32 4, %s27
        %v399 = vld [vmem:[%s383] sm:$0xff]
        %v400 = vld [vmem:[%s383 + $0x8] sm:$0xff]
        %v401 = vld [vmem:[%s383 + $0x10] sm:$0xff]
        %v402 = vld [vmem:[%s383 + $0x18] sm:$0xff]
        %v403 = vld [vmem:[%s388] sm:$0x3]
        %v404 = vld [vmem:[%s391] sm:$0x1]
        %v406 = vlaneseq
        %v407 = vshrl.u32 %v406, 7
        %v408 = vsub.s32 0, %v407
        %v409 = vrot.slane %v404, %v408
        %412 = vset.pattern.permute.xlu0 0
        %413 = vperm.xlu0 %412, %v399
        %v414 = vpop.permute.xlu0 %413
        %417 = vset.pattern.permute.xlu0 0
        %418 = vperm.xlu0 %417, %v400
        %v419 = vpop.permute.xlu0 %418
        %422 = vset.pattern.permute.xlu0 0
        %423 = vperm.xlu0 %422, %v401
        %v424 = vpop.permute.xlu0 %423
        %427 = vset.pattern.permute.xlu0 0
        %428 = vperm.xlu0 %427, %v402
        %v429 = vpop.permute.xlu0 %428
        %v431 = vlaneseq
        %v432 = vshrl.u32 %v431, 7
        %v433 = vsub.s32 0, %v432
        %v434 = vrot.slane %v403, %v433
        %v435 = vmul.f32 %v414, %v434
        %v436 = vmul.f32 %v419, %v434
        %v437 = vmul.f32 %v424, %v434
        %v438 = vmul.f32 %v429, %v434
        %v439 = vadd.f32 %v409, %v435
        %v440 = vadd.f32 %v409, %v436
        %v441 = vadd.f32 %v409, %v437
        %v442 = vadd.f32 %v409, %v438
        %443 = vset.pattern.permute.xlu0 1
        %444 = vperm.xlu0 %443, %v399
        %v445 = vpop.permute.xlu0 %444
        %447 = vset.pattern.permute.xlu0 1
        %448 = vperm.xlu0 %447, %v400
        %v449 = vpop.permute.xlu0 %448
        %451 = vset.pattern.permute.xlu0 1
        %452 = vperm.xlu0 %451, %v401
        %v453 = vpop.permute.xlu0 %452
        %455 = vset.pattern.permute.xlu0 1
        %456 = vperm.xlu0 %455, %v402
        %v457 = vpop.permute.xlu0 %456
        %v459 = vlaneseq
        %v460 = vshrl.u32 %v459, 7
        %v461 = vsub.s32 1, %v460
        %v462 = vrot.slane %v403, %v461
        %v463 = vmul.f32 %v445, %v462
        %v464 = vmul.f32 %v449, %v462
        %v465 = vmul.f32 %v453, %v462
        %v466 = vmul.f32 %v457, %v462
        %v467 = vadd.f32 %v439, %v463
        %v468 = vadd.f32 %v440, %v464
        %v469 = vadd.f32 %v441, %v465
        %v470 = vadd.f32 %v442, %v466
        %v471 = vtanh.pop %v467
        %v472 = vtanh.pop %v468
        %v473 = vtanh.pop %v469
        %v474 = vtanh.pop %v470
        %v475 = vld [vmem:[#allocation2] sm:$0xff]
        %v476 = vld [vmem:[#allocation2 + $0x8] sm:$0xff]
        %v477 = vld [vmem:[#allocation2 + $0x10] sm:$0xff]
        %v478 = vld [vmem:[#allocation2 + $0x18] sm:$0xff]
        %v479 = vld [vmem:[#allocation2 + $0x20] sm:$0xff]
        %v480 = vld [vmem:[#allocation2 + $0x28] sm:$0xff]
        %v481 = vld [vmem:[#allocation2 + $0x30] sm:$0xff]
        %v482 = vld [vmem:[#allocation2 + $0x38] sm:$0xff]
        %v483 = vld [vmem:[#allocation2 + $0x40] sm:$0xff]
        %v484 = vld [vmem:[#allocation2 + $0x48] sm:$0xff]
        %v485 = vld [vmem:[#allocation2 + $0x50] sm:$0xff]
        %v486 = vld [vmem:[#allocation2 + $0x58] sm:$0xff]
        %v487 = vld [vmem:[#allocation2 + $0x60] sm:$0xff]
        %v488 = vld [vmem:[#allocation2 + $0x68] sm:$0xff]
        %v489 = vld [vmem:[#allocation2 + $0x70] sm:$0xff]
        %v490 = vld [vmem:[#allocation2 + $0x78] sm:$0xff]
        %v491 = vld [vmem:[%s394] sm:$0x1]
        %v493 = vlaneseq
        %v494 = vshrl.u32 %v493, 7
        %v495 = vsub.s32 0, %v494
        %v496 = vrot.slane %v491, %v495
        %498 = vmatprep.subr.mxu0 0.0
        %499 = vmatpush1.msra.mxu0 %v490
        %500 = vmatprep.subr.mxu0 0.0
        %501 = vmatpush1.msra.mxu0 %v489
        %502 = vmatprep.subr.mxu0 0.0
        %503 = vmatpush1.msra.mxu0 %v488
        %504 = vmatprep.subr.mxu0 0.0
        %505 = vmatpush1.msra.mxu0 %v487
        %506 = vmatprep.subr.mxu0 0.0
        %507 = vmatpush1.msra.mxu0 %v486
        %508 = vmatprep.subr.mxu0 0.0
        %509 = vmatpush1.msra.mxu0 %v485
        %510 = vmatprep.subr.mxu0 0.0
        %511 = vmatpush1.msra.mxu0 %v484
        %512 = vmatprep.subr.mxu0 0.0
        %513 = vmatpush1.msra.mxu0 %v483
        %514 = vmatprep.subr.mxu0 0.0
        %515 = vmatpush1.msra.mxu0 %v482
        %516 = vmatprep.subr.mxu0 0.0
        %517 = vmatpush1.msra.mxu0 %v481
        %518 = vmatprep.subr.mxu0 0.0
        %519 = vmatpush1.msra.mxu0 %v480
        %520 = vmatprep.subr.mxu0 0.0
        %521 = vmatpush1.msra.mxu0 %v479
        %522 = vmatprep.subr.mxu0 0.0
        %523 = vmatpush1.msra.mxu0 %v478
        %524 = vmatprep.subr.mxu0 0.0
        %525 = vmatpush1.msra.mxu0 %v477
        %526 = vmatprep.subr.mxu0 0.0
        %527 = vmatpush1.msra.mxu0 %v476
        %528 = vmatprep.subr.mxu0 0.0
        %529 = vmatpush1.msra.mxu0 %v475
        %530 = vmatprep.subr.mxu0 0.0
        %531 = vmatpush2.msra.mxu0 0.0
        %532 = vmatprep.subr.mxu0 0.0
        %533 = vmatpush2.msra.mxu0 0.0
        %534 = vmatprep.subr.mxu0 0.0
        %535 = vmatpush2.msra.mxu0 0.0
        %536 = vmatprep.subr.mxu0 0.0
        %537 = vmatpush2.msra.mxu0 0.0
        %538 = vmatprep.subr.mxu0 0.0
        %539 = vmatpush2.msra.mxu0 0.0
        %540 = vmatprep.subr.mxu0 0.0
        %541 = vmatpush2.msra.mxu0 0.0
        %542 = vmatprep.subr.mxu0 0.0
        %543 = vmatpush2.msra.mxu0 0.0
        %544 = vmatprep.subr.mxu0 0.0
        %545 = vmatpush2.msra.mxu0 0.0
        %546 = vmatprep.subr.mxu0 0.0
        %547 = vmatpush2.msra.mxu0 0.0
        %548 = vmatprep.subr.mxu0 0.0
        %549 = vmatpush2.msra.mxu0 0.0
        %550 = vmatprep.subr.mxu0 0.0
        %551 = vmatpush2.msra.mxu0 0.0
        %552 = vmatprep.subr.mxu0 0.0
        %553 = vmatpush2.msra.mxu0 0.0
        %554 = vmatprep.subr.mxu0 0.0
        %555 = vmatpush2.msra.mxu0 0.0
        %556 = vmatprep.subr.mxu0 0.0
        %557 = vmatpush2.msra.mxu0 0.0
        %558 = vmatprep.subr.mxu0 0.0
        %559 = vmatpush2.msra.mxu0 0.0
        %560 = vmatprep.subr.mxu0 0.0
        %561 = vmatpush2.msra.mxu0 0.0
        %562 = vmatprep.mubr.f32.mxu0 0.0
        %563 = vmatmul.mubr.f32.gmra.mxu0 %v471
        %v564 = vpop.f32.mrf.mxu0
        %v565 = vadd.f32 %v496, %v564
        %v566 = vpop.f32.mrf.mxu0
        %567 = vmatprep.mubr.f32.mxu0 0.0
        %568 = vmatmul.mubr.f32.gmra.mxu0 %v472
        %v569 = vpop.f32.mrf.mxu0
        %v570 = vadd.f32 %v496, %v569
        %v571 = vpop.f32.mrf.mxu0
        %572 = vmatprep.mubr.f32.mxu0 0.0
        %573 = vmatmul.mubr.f32.gmra.mxu0 %v473
        %v574 = vpop.f32.mrf.mxu0
        %v575 = vadd.f32 %v496, %v574
        %v576 = vpop.f32.mrf.mxu0
        %577 = vmatprep.mubr.f32.mxu0 0.0
        %578 = vmatmul.mubr.f32.gmra.mxu0 %v474
        %v579 = vpop.f32.mrf.mxu0
        %v580 = vadd.f32 %v496, %v579
        %v581 = vpop.f32.mrf.mxu0
        %582 = vdwg.mxu0
        %v583 = vtanh.pop %v565
        %v584 = vtanh.pop %v570
        %v585 = vtanh.pop %v575
        %v586 = vtanh.pop %v580
        %v587 = vld [vmem:[#allocation5] sm:$0xff]
        %v588 = vld [vmem:[#allocation5 + $0x8] sm:$0xff]
        %v589 = vld [vmem:[#allocation5 + $0x10] sm:$0xff]
        %v590 = vld [vmem:[#allocation5 + $0x18] sm:$0xff]
        %v591 = vld [vmem:[#allocation5 + $0x20] sm:$0xff]
        %v592 = vld [vmem:[#allocation5 + $0x28] sm:$0xff]
        %v593 = vld [vmem:[#allocation5 + $0x30] sm:$0xff]
        %v594 = vld [vmem:[#allocation5 + $0x38] sm:$0xff]
        %v595 = vld [vmem:[#allocation5 + $0x40] sm:$0xff]
        %v596 = vld [vmem:[#allocation5 + $0x48] sm:$0xff]
        %v597 = vld [vmem:[#allocation5 + $0x50] sm:$0xff]
        %v598 = vld [vmem:[#allocation5 + $0x58] sm:$0xff]
        %v599 = vld [vmem:[#allocation5 + $0x60] sm:$0xff]
        %v600 = vld [vmem:[#allocation5 + $0x68] sm:$0xff]
        %v601 = vld [vmem:[#allocation5 + $0x70] sm:$0xff]
        %v602 = vld [vmem:[#allocation5 + $0x78] sm:$0xff]
        %v603 = vld [vmem:[%s397] sm:$0x1]
        %v605 = vlaneseq
        %v606 = vshrl.u32 %v605, 7
        %v607 = vsub.s32 0, %v606
        %v608 = vrot.slane %v603, %v607
        %610 = vmatprep.subr.mxu0 0.0
        %611 = vmatpush1.msra.mxu0 %v602
        %612 = vmatprep.subr.mxu0 0.0
        %613 = vmatpush1.msra.mxu0 %v601
        %614 = vmatprep.subr.mxu0 0.0
        %615 = vmatpush1.msra.mxu0 %v600
        %616 = vmatprep.subr.mxu0 0.0
        %617 = vmatpush1.msra.mxu0 %v599
        %618 = vmatprep.subr.mxu0 0.0
        %619 = vmatpush1.msra.mxu0 %v598
        %620 = vmatprep.subr.mxu0 0.0
        %621 = vmatpush1.msra.mxu0 %v597
        %622 = vmatprep.subr.mxu0 0.0
        %623 = vmatpush1.msra.mxu0 %v596
        %624 = vmatprep.subr.mxu0 0.0
        %625 = vmatpush1.msra.mxu0 %v595
        %626 = vmatprep.subr.mxu0 0.0
        %627 = vmatpush1.msra.mxu0 %v594
        %628 = vmatprep.subr.mxu0 0.0
        %629 = vmatpush1.msra.mxu0 %v593
        %630 = vmatprep.subr.mxu0 0.0
        %631 = vmatpush1.msra.mxu0 %v592
        %632 = vmatprep.subr.mxu0 0.0
        %633 = vmatpush1.msra.mxu0 %v591
        %634 = vmatprep.subr.mxu0 0.0
        %635 = vmatpush1.msra.mxu0 %v590
        %636 = vmatprep.subr.mxu0 0.0
        %637 = vmatpush1.msra.mxu0 %v589
        %638 = vmatprep.subr.mxu0 0.0
        %639 = vmatpush1.msra.mxu0 %v588
        %640 = vmatprep.subr.mxu0 0.0
        %641 = vmatpush1.msra.mxu0 %v587
        %642 = vmatprep.subr.mxu0 0.0
        %643 = vmatpush2.msra.mxu0 0.0
        %644 = vmatprep.subr.mxu0 0.0
        %645 = vmatpush2.msra.mxu0 0.0
        %646 = vmatprep.subr.mxu0 0.0
        %647 = vmatpush2.msra.mxu0 0.0
        %648 = vmatprep.subr.mxu0 0.0
        %649 = vmatpush2.msra.mxu0 0.0
        %650 = vmatprep.subr.mxu0 0.0
        %651 = vmatpush2.msra.mxu0 0.0
        %652 = vmatprep.subr.mxu0 0.0
        %653 = vmatpush2.msra.mxu0 0.0
        %654 = vmatprep.subr.mxu0 0.0
        %655 = vmatpush2.msra.mxu0 0.0
        %656 = vmatprep.subr.mxu0 0.0
        %657 = vmatpush2.msra.mxu0 0.0
        %658 = vmatprep.subr.mxu0 0.0
        %659 = vmatpush2.msra.mxu0 0.0
        %660 = vmatprep.subr.mxu0 0.0
        %661 = vmatpush2.msra.mxu0 0.0
        %662 = vmatprep.subr.mxu0 0.0
        %663 = vmatpush2.msra.mxu0 0.0
        %664 = vmatprep.subr.mxu0 0.0
        %665 = vmatpush2.msra.mxu0 0.0
        %666 = vmatprep.subr.mxu0 0.0
        %667 = vmatpush2.msra.mxu0 0.0
        %668 = vmatprep.subr.mxu0 0.0
        %669 = vmatpush2.msra.mxu0 0.0
        %670 = vmatprep.subr.mxu0 0.0
        %671 = vmatpush2.msra.mxu0 0.0
        %672 = vmatprep.subr.mxu0 0.0
        %673 = vmatpush2.msra.mxu0 0.0
        %674 = vmatprep.mubr.f32.mxu0 0.0
        %675 = vmatmul.mubr.f32.gmra.mxu0 %v583
        %v676 = vpop.f32.mrf.mxu0
        %v677 = vadd.f32 %v608, %v676
        %v678 = vpop.f32.mrf.mxu0
        %679 = vmatprep.mubr.f32.mxu0 0.0
        %680 = vmatmul.mubr.f32.gmra.mxu0 %v584
        %v681 = vpop.f32.mrf.mxu0
        %v682 = vadd.f32 %v608, %v681
        %v683 = vpop.f32.mrf.mxu0
        %684 = vmatprep.mubr.f32.mxu0 0.0
        %685 = vmatmul.mubr.f32.gmra.mxu0 %v585
        %v686 = vpop.f32.mrf.mxu0
        %v687 = vadd.f32 %v608, %v686
        %v688 = vpop.f32.mrf.mxu0
        %689 = vmatprep.mubr.f32.mxu0 0.0
        %690 = vmatmul.mubr.f32.gmra.mxu0 %v586
        %v691 = vpop.f32.mrf.mxu0
        %v692 = vadd.f32 %v608, %v691
        %v693 = vpop.f32.mrf.mxu0
        %694 = vdwg.mxu0
        %695 = vst [vmem:[%s378] sm:$0xff] %v677
        %696 = vst [vmem:[%s378 + $0x8] sm:$0xff] %v682
        %697 = vst [vmem:[%s378 + $0x10] sm:$0xff] %v687
        %698 = vst [vmem:[%s378 + $0x18] sm:$0xff] %v692
        %s699 = sand.u32 %s227, 1
        %s700 = scalar_lea.sflag [#allocation4], %s699
        %s701 = sand.u32 %s227, 1
        %s702 = smul.addr %s701, 32
        %s703 = scalar_lea.vmem [#allocation7], %s702
        // Predicated region
        $region57: #{tpu_custom_call.1} parent=47 // pred_check
          %p704 = pneg %p237
        $region58: #{tpu_custom_call.1} parent=47 // pred_check_branch
          %706 = sbr.rel (%p704) target = $region60
        $region59: #{tpu_custom_call.1} parent=47 // pred_region
          %s707 = smul.u32 4, %s27
          %s709 = ssub.s32 512, 512
          %710 = vsyncadd %s700, %s709
          %s711 = smul.addr %s28, 8
          %s712 = sadd.s32 %s707, %s711
          %s713 = smul.addr %s712, 128
          %s714 = scalar_lea.hbm %s7, %s713
          %s715 = sshll.u32 %s703, 4
          %s716 = int_to_ptr.vmem [resolvable:$true] %s715
          %721 = dma.vmem_to_hbm [thread:$0]  %s716, 512, %s714, %s700, 128, 128, 8
        $region60: #{tpu_custom_call.1} parent=47 // pred_fallthru
          _
      $region48: #{tpu_custom_call.1} parent=5 // pred_fallthru
        _
      %p722 = scmp.le.s32.totalorder 2, %s18
      // Predicated region
      $region61: #{tpu_custom_call.1} parent=5 // pred_check
        %p723 = pneg %p722
      $region62: #{tpu_custom_call.1} parent=5 // pred_check_branch
        %725 = sbr.rel (%p723) target = $region64
      $region63: #{tpu_custom_call.1} parent=5 // pred_region
        %s726 = ssub.s32 %s18, 2
        // Predicated region
        $region65: #{tpu_custom_call.1} parent=63 // pred_check
          %p727 = pneg %p243
        $region66: #{tpu_custom_call.1} parent=63 // pred_check_branch
          %729 = sbr.rel (%p727) target = $region68
        $region67: #{tpu_custom_call.1} parent=63 // pred_region
          %s730 = sand.u32 %s228, 1
          %s731 = scalar_lea.sflag [#allocation4], %s730
          %s732 = sand.u32 %s228, 1
          %s733 = smul.addr %s732, 32
          %s734 = scalar_lea.vmem [#allocation7], %s733
          %735 = dma.done %s731, 512
        $region68: #{tpu_custom_call.1} parent=63 // pred_fallthru
          _
      $region64: #{tpu_custom_call.1} parent=5 // pred_fallthru
        _
    $region6: #{tpu_custom_call.1} parent=1 // loop_footer
      %s22 = sadd.s32 1, %s18
    $region7: #{tpu_custom_call.1} parent=1 // loop_footer_branch
      %17 = sbr.rel target = $region3
    $region8: #{tpu_custom_call.1} parent=1 // loop_exit
      _
    %736 = vsyncpa [#allocation3], 1
    %s737 = scalar_lea.sflag [#allocation3], 1
    %738 = vsyncpa %s737, 1
    %739 = vsyncpa [#allocation6], 1
    %740 = vsyncpa [#allocation4], 1
    %s741 = scalar_lea.sflag [#allocation4], 1
    %742 = vsyncpa %s741, 1

</llo_original>
